<compile_context>
chip_gen: v5e
topology: v5e:2x2
jax: 0.10.0
libtpu: 0.0.40
codegen_flags: <defaults>
</compile_context>

<pallas_src>
import functools

import numpy as np
import jax
import jax.numpy as jnp
from jax.experimental import pallas as pl
from jax.experimental.pallas import tpu as pltpu


def _masked_conv_kernel(x_ref, w_ref, b_ref, m_ref, o_ref, *,
                        taps_meta, c_out, c_out_pad, b_blk):
    """One batch block (B_blk images) per grid step.

    x_ref : (B_blk, c_in, L)            lane-dense input slab (compute dtype)
    w_ref : (T*c_out_pad, c_in)         packed masked weights (compute dtype)
    b_ref : (c_out_pad, 1)              bias, f32
    m_ref : (T, 1, L)                   per-tap boundary masks, f32
    o_ref : (B_blk, c_out, L)           lane-dense output slab (NCHW-flattened)
    """
    L = o_ref.shape[-1]
    w = w_ref[...]                        # fetched once per step
    bias = b_ref[...]
    mvals = m_ref[...]                    # (T, 1, L)

    for b in range(b_blk):                # static unroll over the batch block
        xb = x_ref[b]                     # (c_in, L)
        # Single MXU matmul off the raw input slab; taps combined afterwards.
        y = jnp.dot(w, xb, preferred_element_type=jnp.float32)  # (T*c_out_pad, L)

        acc = jnp.broadcast_to(bias, (c_out_pad, L))            # f32
        for t, (shift, needs_mask) in enumerate(taps_meta):
            yt = y[t * c_out_pad:(t + 1) * c_out_pad]            # sublane-aligned
            if shift:
                yt = pltpu.roll(yt, shift=shift, axis=1)         # XLU lane rotate
            if needs_mask:
                yt = yt * mvals[t]                               # (1, L) boundary mask
            acc = acc + yt

        o_ref[b] = acc[:c_out].astype(o_ref.dtype)


def masked_conv2d(x_nchw, weight_oihw, bias, mask, *, compute_dtype=None,
                  b_blk=None):
    """Pallas implementation of MaskedConvolution.forward (NCHW in / NCHW out).

    `mask` must be concrete (registered buffer in the module); it is inspected
    at trace time to statically prune fully-masked kernel taps.
    """
    c_out, c_in, kH, kW = weight_oihw.shape
    # TODO(synk): even kernels / stride / dilation not implemented.
    assert kH % 2 == 1 and kW % 2 == 1, "only odd kernel sizes supported"
    ph, pw = (kH - 1) // 2, (kW - 1) // 2
    N, _, H, W = x_nchw.shape
    L = H * W
    out_dtype = x_nchw.dtype
    compute_dtype = out_dtype if compute_dtype is None else compute_dtype

    mask_np = np.asarray(mask)
    taps = tuple((kh, kw) for kh in range(kH) for kw in range(kW)
                 if mask_np[kh, kw] != 0)
    if not taps:   # fully-masked conv degenerates to a bias broadcast
        return jnp.broadcast_to(
            bias.astype(out_dtype)[None, :, None, None], (N, c_out, H, W))

    T = len(taps)
    c_out_pad = -(-c_out // 8) * 8

    # ---- parameter glue (tiny, done once) ----------------------------------
    # Packed masked weights: (T, c_out_pad, c_in) -> (T*c_out_pad, c_in), so the
    # per-tap rows of the matmul result are sublane-aligned slices.
    w_masked = (weight_oihw.astype(jnp.float32)
                * jnp.asarray(mask_np, jnp.float32)[None, None, :, :])
    w_pack = jnp.zeros((T, c_out_pad, c_in), jnp.float32)
    for t, (kh, kw) in enumerate(taps):
        w_pack = w_pack.at[t, :c_out, :].set(w_masked[:, :, kh, kw])
    w_pack = w_pack.reshape(T * c_out_pad, c_in).astype(compute_dtype)

    b_pad = jnp.zeros((c_out_pad, 1), jnp.float32)
    b_pad = b_pad.at[:c_out, 0].set(bias.astype(jnp.float32))

    # Per-tap flat-lane shift + boundary-validity mask (static, built in numpy).
    ii, jj = np.meshgrid(np.arange(H), np.arange(W), indexing="ij")
    taps_meta = []
    masks_np = np.zeros((T, 1, L), np.float32)
    for t, (kh, kw) in enumerate(taps):
        dh, dw = kh - ph, kw - pw
        shift = (-(dh * W + dw)) % L
        ok = ((ii + dh >= 0) & (ii + dh < H) & (jj + dw >= 0) & (jj + dw < W))
        masks_np[t, 0, :] = ok.reshape(-1).astype(np.float32)
        taps_meta.append((shift, not bool(ok.all())))
    taps_meta = tuple(taps_meta)
    masks = jnp.asarray(masks_np)

    # ---- batch-block size under an explicit VMEM budget ---------------------
    in_bytes = c_in * L * jnp.dtype(compute_dtype).itemsize
    out_bytes = c_out * L * jnp.dtype(out_dtype).itemsize
    y_bytes = T * c_out_pad * L * 4
    w_bytes = T * c_out_pad * c_in * jnp.dtype(compute_dtype).itemsize
    if b_blk is None:
        budget = 12 * 1024 * 1024          # safe under every chip's scoped default
        avail = max(budget - 2 * (y_bytes + w_bytes), 0)
        b_blk = int(avail // max(2 * (in_bytes + out_bytes), 1))
        b_blk = max(1, min(b_blk, 8, N))
        if N >= 8 and N // b_blk < 4:      # keep >=4 steps so v7x's 2 TCs /
            b_blk = max(1, N // 4)         # the DMA pipeline have work

    n_blocks = -(-N // b_blk)
    n_pad = n_blocks * b_blk

    x = x_nchw.reshape(N, c_in, L).astype(compute_dtype)   # free reshape
    if n_pad != N:
        x = jnp.pad(x, ((0, n_pad - N), (0, 0), (0, 0)))

    kernel = functools.partial(
        _masked_conv_kernel, taps_meta=taps_meta,
        c_out=c_out, c_out_pad=c_out_pad, b_blk=b_blk)

    out_flat = pl.pallas_call(
        kernel,
        out_shape=jax.ShapeDtypeStruct((n_pad, c_out, L), out_dtype),
        grid=(n_blocks,),
        in_specs=[
            pl.BlockSpec((b_blk, c_in, L), lambda n: (n, 0, 0)),
            pl.BlockSpec((T * c_out_pad, c_in), lambda n: (0, 0)),
            pl.BlockSpec((c_out_pad, 1), lambda n: (0, 0)),
            pl.BlockSpec((T, 1, L), lambda n: (0, 0, 0)),
        ],
        out_specs=pl.BlockSpec((b_blk, c_out, L), lambda n: (n, 0, 0)),
        compiler_params=pltpu.CompilerParams(dimension_semantics=("parallel",)),
    )(x, w_pack, b_pad, masks)

    if n_pad != N:
        out_flat = out_flat[:N]
    # Contiguity-preserving (free) reshape back to NCHW - no transpose pass.
    return out_flat.reshape(N, c_out, H, W)


if __name__ == "__main__":
    key = jax.random.PRNGKey(0)
    k_x, k_w, k_b = jax.random.split(key, 3)

    # Small shapes consistent with the module: x is NCHW.
    N, c_in, H, W = 2, 4, 16, 16
    c_out, kH, kW = 8, 3, 3

    x = jax.random.normal(k_x, (N, c_in, H, W), dtype=jnp.float32)
    weight = jax.random.normal(k_w, (c_out, c_in, kH, kW), dtype=jnp.float32) * 0.1
    bias = jax.random.normal(k_b, (c_out,), dtype=jnp.float32) * 0.1

    # Deterministic PixelCNN-style mask: zero out "future" pixels.
    mask = jnp.ones((kH, kW), dtype=jnp.float32)
    mask = mask.at[kH // 2, kW // 2 + 1:].set(0.0)
    mask = mask.at[kH // 2 + 1:, :].set(0.0)

    pad = (((kH - 1) // 2,) * 2, ((kW - 1) // 2,) * 2)
    w_masked = weight * mask[None, None, :, :]

    # --- f32 path (matches the PyTorch module's numerics) ---
    out = jax.block_until_ready(masked_conv2d(x, weight, bias, mask))
    ref = jax.lax.conv_general_dilated(
        x, w_masked, window_strides=(1, 1), padding=pad,
        dimension_numbers=("NCHW", "OIHW", "NCHW"),
    ) + bias[None, :, None, None]
    assert out.shape == ref.shape, (out.shape, ref.shape)
    assert jnp.allclose(out, ref, atol=1e-4, rtol=1e-4), float(
        jnp.max(jnp.abs(out - ref)))

    # --- bf16-storage / f32-accumulate path (bandwidth optimisation) ---
    out_bf16 = jax.block_until_ready(
        masked_conv2d(x, weight, bias, mask, compute_dtype=jnp.bfloat16))
    ref_bf16 = jax.lax.conv_general_dilated(
        x.astype(jnp.bfloat16), w_masked.astype(jnp.bfloat16),
        window_strides=(1, 1), padding=pad,
        dimension_numbers=("NCHW", "OIHW", "NCHW"),
        preferred_element_type=jnp.float32,
    ) + bias[None, :, None, None]
    assert jnp.allclose(out_bf16, ref_bf16, atol=2e-2, rtol=2e-2), float(
        jnp.max(jnp.abs(out_bf16 - ref_bf16)))

    print("KERNEL_OK")
</pallas_src>

<mosaic_0001>
module attributes {stable_mosaic.version = 11 : i64} {
  func.func @_masked_conv_kernel(%arg0: i32, %arg1: memref<2x4x256xf32, #tpu.memory_space<vmem>>, %arg2: memref<40x4xf32, #tpu.memory_space<vmem>>, %arg3: memref<8x1xf32, #tpu.memory_space<vmem>>, %arg4: memref<5x1x256xf32, #tpu.memory_space<vmem>>, %arg5: memref<2x8x256xf32, #tpu.memory_space<vmem>>) attributes {dimension_semantics = [#tpu.dimension_semantics<parallel>], iteration_bounds = array<i64: 1>, scalar_prefetch = 0 : i64, scratch_operands = 0 : i64, tpu.core_type = #tpu.core_type<tc>, window_params = [{transform_indices = @transform_0, window_bounds = array<i64: 2, 4, 256>}, {pipeline_mode = #tpu.pipeline_mode<synchronous>, transform_indices = @transform_1, window_bounds = array<i64: 40, 4>}, {pipeline_mode = #tpu.pipeline_mode<synchronous>, transform_indices = @transform_2, window_bounds = array<i64: 8, 1>}, {pipeline_mode = #tpu.pipeline_mode<synchronous>, transform_indices = @transform_3, window_bounds = array<i64: 5, 1, 256>}, {transform_indices = @transform_4, window_bounds = array<i64: 2, 8, 256>}]} {
    %c0 = arith.constant 0 : index
    %c0_0 = arith.constant 0 : index
    %0 = vector.load %arg2[%c0, %c0_0] : memref<40x4xf32, #tpu.memory_space<vmem>>, vector<40x4xf32>
    %c0_1 = arith.constant 0 : index
    %c0_2 = arith.constant 0 : index
    %1 = vector.load %arg3[%c0_1, %c0_2] : memref<8x1xf32, #tpu.memory_space<vmem>>, vector<8x1xf32>
    %c0_3 = arith.constant 0 : index
    %c0_4 = arith.constant 0 : index
    %c0_5 = arith.constant 0 : index
    %2 = vector.load %arg4[%c0_3, %c0_4, %c0_5] : memref<5x1x256xf32, #tpu.memory_space<vmem>>, vector<5x1x256xf32>
    %c0_6 = arith.constant 0 : index
    %c0_7 = arith.constant 0 : index
    %c0_8 = arith.constant 0 : index
    %3 = vector.load %arg1[%c0_6, %c0_7, %c0_8] : memref<2x4x256xf32, #tpu.memory_space<vmem>>, vector<1x4x256xf32>
    %4 = vector.shape_cast %3 : vector<1x4x256xf32> to vector<4x256xf32>
    %cst = arith.constant dense<0.000000e+00> : vector<40x256xf32>
    %5 = tpu.matmul %0, %4, %cst {dimension_numbers = #tpu.dot_dimension_numbers<[1], [0], [0], [1], [0, 0, 1, 1], [], []>} : vector<40x4xf32>, vector<4x256xf32>, vector<40x256xf32> -> vector<40x256xf32>
    %6 = vector.shape_cast %1 : vector<8x1xf32> to vector<8x1xf32>
    %7 = vector.broadcast %6 : vector<8x1xf32> to vector<8x256xf32>
    %8 = vector.extract_strided_slice %5 {offsets = [0, 0], sizes = [8, 256], strides = [1, 1]} : vector<40x256xf32> to vector<8x256xf32>
    %c17_i32 = arith.constant 17 : i32
    %9 = tpu.dynamic_rotate %8 by %c17_i32 dim 1 : vector<8x256xf32>, i32 -> vector<8x256xf32>
    %10 = vector.extract_strided_slice %2 {offsets = [0, 0, 0], sizes = [1, 1, 256], strides = [1, 1, 1]} : vector<5x1x256xf32> to vector<1x1x256xf32>
    %11 = vector.shape_cast %10 : vector<1x1x256xf32> to vector<1x256xf32>
    %12 = vector.broadcast %11 : vector<1x256xf32> to vector<8x256xf32>
    %13 = arith.mulf %9, %12 : vector<8x256xf32>
    %14 = arith.addf %7, %13 : vector<8x256xf32>
    %15 = vector.extract_strided_slice %5 {offsets = [8, 0], sizes = [8, 256], strides = [1, 1]} : vector<40x256xf32> to vector<8x256xf32>
    %c16_i32 = arith.constant 16 : i32
    %16 = tpu.dynamic_rotate %15 by %c16_i32 dim 1 : vector<8x256xf32>, i32 -> vector<8x256xf32>
    %17 = vector.extract_strided_slice %2 {offsets = [1, 0, 0], sizes = [1, 1, 256], strides = [1, 1, 1]} : vector<5x1x256xf32> to vector<1x1x256xf32>
    %18 = vector.shape_cast %17 : vector<1x1x256xf32> to vector<1x256xf32>
    %19 = vector.broadcast %18 : vector<1x256xf32> to vector<8x256xf32>
    %20 = arith.mulf %16, %19 : vector<8x256xf32>
    %21 = arith.addf %14, %20 : vector<8x256xf32>
    %22 = vector.extract_strided_slice %5 {offsets = [16, 0], sizes = [8, 256], strides = [1, 1]} : vector<40x256xf32> to vector<8x256xf32>
    %c15_i32 = arith.constant 15 : i32
    %23 = tpu.dynamic_rotate %22 by %c15_i32 dim 1 : vector<8x256xf32>, i32 -> vector<8x256xf32>
    %24 = vector.extract_strided_slice %2 {offsets = [2, 0, 0], sizes = [1, 1, 256], strides = [1, 1, 1]} : vector<5x1x256xf32> to vector<1x1x256xf32>
    %25 = vector.shape_cast %24 : vector<1x1x256xf32> to vector<1x256xf32>
    %26 = vector.broadcast %25 : vector<1x256xf32> to vector<8x256xf32>
    %27 = arith.mulf %23, %26 : vector<8x256xf32>
    %28 = arith.addf %21, %27 : vector<8x256xf32>
    %29 = vector.extract_strided_slice %5 {offsets = [24, 0], sizes = [8, 256], strides = [1, 1]} : vector<40x256xf32> to vector<8x256xf32>
    %c1_i32 = arith.constant 1 : i32
    %30 = tpu.dynamic_rotate %29 by %c1_i32 dim 1 : vector<8x256xf32>, i32 -> vector<8x256xf32>
    %31 = vector.extract_strided_slice %2 {offsets = [3, 0, 0], sizes = [1, 1, 256], strides = [1, 1, 1]} : vector<5x1x256xf32> to vector<1x1x256xf32>
    %32 = vector.shape_cast %31 : vector<1x1x256xf32> to vector<1x256xf32>
    %33 = vector.broadcast %32 : vector<1x256xf32> to vector<8x256xf32>
    %34 = arith.mulf %30, %33 : vector<8x256xf32>
    %35 = arith.addf %28, %34 : vector<8x256xf32>
    %36 = vector.extract_strided_slice %5 {offsets = [32, 0], sizes = [8, 256], strides = [1, 1]} : vector<40x256xf32> to vector<8x256xf32>
    %37 = arith.addf %35, %36 : vector<8x256xf32>
    %c0_9 = arith.constant 0 : index
    %c0_10 = arith.constant 0 : index
    %c0_11 = arith.constant 0 : index
    %38 = vector.load %arg5[%c0_9, %c0_10, %c0_11] : memref<2x8x256xf32, #tpu.memory_space<vmem>>, vector<1x8x256xf32>
    %39 = vector.shape_cast %38 : vector<1x8x256xf32> to vector<8x256xf32>
    %40 = vector.shape_cast %37 : vector<8x256xf32> to vector<1x8x256xf32>
    tpu.vector_store %arg5[%c0_9, %c0_10, %c0_11], %40 {strides = array<i32>} : memref<2x8x256xf32, #tpu.memory_space<vmem>>, vector<1x8x256xf32>,
    %c1 = arith.constant 1 : index
    %c0_12 = arith.constant 0 : index
    %c0_13 = arith.constant 0 : index
    %41 = vector.load %arg1[%c1, %c0_12, %c0_13] : memref<2x4x256xf32, #tpu.memory_space<vmem>>, vector<1x4x256xf32>
    %42 = vector.shape_cast %41 : vector<1x4x256xf32> to vector<4x256xf32>
    %cst_14 = arith.constant dense<0.000000e+00> : vector<40x256xf32>
    %43 = tpu.matmul %0, %42, %cst_14 {dimension_numbers = #tpu.dot_dimension_numbers<[1], [0], [0], [1], [0, 0, 1, 1], [], []>} : vector<40x4xf32>, vector<4x256xf32>, vector<40x256xf32> -> vector<40x256xf32>
    %44 = vector.shape_cast %1 : vector<8x1xf32> to vector<8x1xf32>
    %45 = vector.broadcast %44 : vector<8x1xf32> to vector<8x256xf32>
    %46 = vector.extract_strided_slice %43 {offsets = [0, 0], sizes = [8, 256], strides = [1, 1]} : vector<40x256xf32> to vector<8x256xf32>
    %c17_i32_15 = arith.constant 17 : i32
    %47 = tpu.dynamic_rotate %46 by %c17_i32_15 dim 1 : vector<8x256xf32>, i32 -> vector<8x256xf32>
    %48 = vector.extract_strided_slice %2 {offsets = [0, 0, 0], sizes = [1, 1, 256], strides = [1, 1, 1]} : vector<5x1x256xf32> to vector<1x1x256xf32>
    %49 = vector.shape_cast %48 : vector<1x1x256xf32> to vector<1x256xf32>
    %50 = vector.broadcast %49 : vector<1x256xf32> to vector<8x256xf32>
    %51 = arith.mulf %47, %50 : vector<8x256xf32>
    %52 = arith.addf %45, %51 : vector<8x256xf32>
    %53 = vector.extract_strided_slice %43 {offsets = [8, 0], sizes = [8, 256], strides = [1, 1]} : vector<40x256xf32> to vector<8x256xf32>
    %c16_i32_16 = arith.constant 16 : i32
    %54 = tpu.dynamic_rotate %53 by %c16_i32_16 dim 1 : vector<8x256xf32>, i32 -> vector<8x256xf32>
    %55 = vector.extract_strided_slice %2 {offsets = [1, 0, 0], sizes = [1, 1, 256], strides = [1, 1, 1]} : vector<5x1x256xf32> to vector<1x1x256xf32>
    %56 = vector.shape_cast %55 : vector<1x1x256xf32> to vector<1x256xf32>
    %57 = vector.broadcast %56 : vector<1x256xf32> to vector<8x256xf32>
    %58 = arith.mulf %54, %57 : vector<8x256xf32>
    %59 = arith.addf %52, %58 : vector<8x256xf32>
    %60 = vector.extract_strided_slice %43 {offsets = [16, 0], sizes = [8, 256], strides = [1, 1]} : vector<40x256xf32> to vector<8x256xf32>
    %c15_i32_17 = arith.constant 15 : i32
    %61 = tpu.dynamic_rotate %60 by %c15_i32_17 dim 1 : vector<8x256xf32>, i32 -> vector<8x256xf32>
    %62 = vector.extract_strided_slice %2 {offsets = [2, 0, 0], sizes = [1, 1, 256], strides = [1, 1, 1]} : vector<5x1x256xf32> to vector<1x1x256xf32>
    %63 = vector.shape_cast %62 : vector<1x1x256xf32> to vector<1x256xf32>
    %64 = vector.broadcast %63 : vector<1x256xf32> to vector<8x256xf32>
    %65 = arith.mulf %61, %64 : vector<8x256xf32>
    %66 = arith.addf %59, %65 : vector<8x256xf32>
    %67 = vector.extract_strided_slice %43 {offsets = [24, 0], sizes = [8, 256], strides = [1, 1]} : vector<40x256xf32> to vector<8x256xf32>
    %c1_i32_18 = arith.constant 1 : i32
    %68 = tpu.dynamic_rotate %67 by %c1_i32_18 dim 1 : vector<8x256xf32>, i32 -> vector<8x256xf32>
    %69 = vector.extract_strided_slice %2 {offsets = [3, 0, 0], sizes = [1, 1, 256], strides = [1, 1, 1]} : vector<5x1x256xf32> to vector<1x1x256xf32>
    %70 = vector.shape_cast %69 : vector<1x1x256xf32> to vector<1x256xf32>
    %71 = vector.broadcast %70 : vector<1x256xf32> to vector<8x256xf32>
    %72 = arith.mulf %68, %71 : vector<8x256xf32>
    %73 = arith.addf %66, %72 : vector<8x256xf32>
    %74 = vector.extract_strided_slice %43 {offsets = [32, 0], sizes = [8, 256], strides = [1, 1]} : vector<40x256xf32> to vector<8x256xf32>
    %75 = arith.addf %73, %74 : vector<8x256xf32>
    %c1_19 = arith.constant 1 : index
    %c0_20 = arith.constant 0 : index
    %c0_21 = arith.constant 0 : index
    %76 = vector.load %arg5[%c1_19, %c0_20, %c0_21] : memref<2x8x256xf32, #tpu.memory_space<vmem>>, vector<1x8x256xf32>
    %77 = vector.shape_cast %76 : vector<1x8x256xf32> to vector<8x256xf32>
    %78 = vector.shape_cast %75 : vector<8x256xf32> to vector<1x8x256xf32>
    tpu.vector_store %arg5[%c1_19, %c0_20, %c0_21], %78 {strides = array<i32>} : memref<2x8x256xf32, #tpu.memory_space<vmem>>, vector<1x8x256xf32>,
    return
  }
  func.func @transform_0(%arg0: i32) -> (i32, i32, i32) {
    %c0_i32 = arith.constant 0 : i32
    %c0_i32_0 = arith.constant 0 : i32
    %c0_i32_1 = arith.constant 0 : i32
    return %arg0, %c0_i32, %c0_i32_0 : i32, i32, i32
  }
  func.func @transform_1(%arg0: i32) -> (i32, i32) {
    %c0_i32 = arith.constant 0 : i32
    %c0_i32_0 = arith.constant 0 : i32
    %c0_i32_1 = arith.constant 0 : i32
    return %c0_i32, %c0_i32_0 : i32, i32
  }
  func.func @transform_2(%arg0: i32) -> (i32, i32) {
    %c0_i32 = arith.constant 0 : i32
    %c0_i32_0 = arith.constant 0 : i32
    %c0_i32_1 = arith.constant 0 : i32
    return %c0_i32, %c0_i32_0 : i32, i32
  }
  func.func @transform_3(%arg0: i32) -> (i32, i32, i32) {
    %c0_i32 = arith.constant 0 : i32
    %c0_i32_0 = arith.constant 0 : i32
    %c0_i32_1 = arith.constant 0 : i32
    %c0_i32_2 = arith.constant 0 : i32
    return %c0_i32, %c0_i32_0, %c0_i32_1 : i32, i32, i32
  }
  func.func @transform_4(%arg0: i32) -> (i32, i32, i32) {
    %c0_i32 = arith.constant 0 : i32
    %c0_i32_0 = arith.constant 0 : i32
    %c0_i32_1 = arith.constant 0 : i32
    return %arg0, %c0_i32, %c0_i32_0 : i32, i32, i32
  }
}

</mosaic_0001>

<llo_original>
// kernel: tpu_custom_call.1
$region0: #{tpu_custom_call.1}
  #allocation0 [shape = 'u32[]', space=smem, size = 0x4, offset = 0x4, fixed_abs, tag = 'smem constant byte address 0x4 - core index']
  #allocation1 [shape = 'u32[72,128]{1,0:T(1,128)}', space=vmem, size = 0x9000, scoped, tag = 'internal scratch']
  %s0 = inlined_call_operand.vmem [shape: f32[2,4,256], index: 0, kind: input, shape index: {}]
  %s1 = inlined_call_operand.vmem [shape: f32[40,4], index: 1, kind: input, shape index: {}]
  %s2 = inlined_call_operand.vmem [shape: f32[8,1], index: 2, kind: input, shape index: {}]
  %s3 = inlined_call_operand.vmem [shape: f32[5,1,256], index: 3, kind: input, shape index: {}]
  %s4 = inlined_call_operand.hbm [shape: f32[2,8,256], index: 4, kind: output, shape index: {}]
  %s5 = sld [smem:[#allocation0]]
  $region26: #{tpu_custom_call.1} parent=0
    _
  %s7 = ssub.s32 1, %s5
  %s8 = scalar_select 0, %s7, %s5
  $region1: #{tpu_custom_call.1} parent=0
    #allocation2 [shape = 'u8[16384]{0}', space=vmem, size = 0x4000, scoped, tag = 'output window, operand 0, single buffered']
    #allocation3 [shape = 's32[1]{0}', space=sflag, size = 0x4, scoped, tag = 'scoped memory for tpu_custom_call.1']
    %9 = vsyncpa [#allocation3], 0
    // Predicated region
    $region2: #{tpu_custom_call.1} parent=1 // pred_check
      _
    $region3: #{tpu_custom_call.1} parent=1 // pred_check_branch
      %11 = sbr.rel (0) target = $region5
    $region4: #{tpu_custom_call.1} parent=1 // pred_region
      _
    $region5: #{tpu_custom_call.1} parent=1 // pred_fallthru
      _
    // Predicated region
    $region6: #{tpu_custom_call.1} parent=1 // pred_check
      _
    $region7: #{tpu_custom_call.1} parent=1 // pred_check_branch
      %13 = sbr.rel (0) target = $region9
    $region8: #{tpu_custom_call.1} parent=1 // pred_region
      _
    $region9: #{tpu_custom_call.1} parent=1 // pred_fallthru
      _
    // Predicated region
    $region10: #{tpu_custom_call.1} parent=1 // pred_check
      _
    $region11: #{tpu_custom_call.1} parent=1 // pred_check_branch
      %15 = sbr.rel (0) target = $region13
    $region12: #{tpu_custom_call.1} parent=1 // pred_region
      _
    $region13: #{tpu_custom_call.1} parent=1 // pred_fallthru
      _
    // Predicated region
    $region14: #{tpu_custom_call.1} parent=1 // pred_check
      _
    $region15: #{tpu_custom_call.1} parent=1 // pred_check_branch
      %17 = sbr.rel (0) target = $region17
    $region16: #{tpu_custom_call.1} parent=1 // pred_region
      _
    $region17: #{tpu_custom_call.1} parent=1 // pred_fallthru
      _
    %v18 = vld [vmem:[%s1] sm:$0xff]
    %v19 = vld [vmem:[%s1 + $0x8] sm:$0xff]
    %v20 = vld [vmem:[%s1 + $0x10] sm:$0xff]
    %v21 = vld [vmem:[%s1 + $0x18] sm:$0xff]
    %v22 = vld [vmem:[%s1 + $0x20] sm:$0xff]
    %v23 = vld [vmem:[%s2] sm:$0xff]
    %v24 = vld [vmem:[%s3] sm:$0x3]
    %v25 = vld [vmem:[%s3 + $0x2] sm:$0x3]
    %v26 = vld [vmem:[%s3 + $0x4] sm:$0x3]
    %v27 = vld [vmem:[%s3 + $0x6] sm:$0x3]
    %v28 = vld [vmem:[%s0] sm:$0xff]
    %30 = vst [vmem:[#allocation1] ss:$2 sm:$0xff] %v28
    %v31 = vld.sshfl [vmem:[#allocation1] sm:$0xff pattern:$0x75316420]
    %v32 = vld.sshfl [vmem:[#allocation1 + $0x8] sm:$0xff pattern:$0x75316420]
    %vm33 = vcmask 31744
    %v35 = vsel %vm33, %v18, 0
    %v38 = vsel %vm33, %v19, 0
    %v41 = vsel %vm33, %v20, 0
    %v44 = vsel %vm33, %v21, 0
    %v47 = vsel %vm33, %v22, 0
    %vm49 = vcmask 1043456
    %v50 = vsel %vm49, %v31, 0
    %v52 = vsel %vm49, %v32, 0
    %54 = vmatpush.msra.mxu0 0.0
    %55 = vmatpush.msra.mxu0 0.0
    %56 = vmatpush.msra.mxu0 0.0
    %57 = vmatpush.msra.mxu0 0.0
    %58 = vmatpush.msra.mxu0 0.0
    %59 = vmatpush.msra.mxu0 0.0
    %60 = vmatpush.msra.mxu0 0.0
    %61 = vmatpush.msra.mxu0 0.0
    %62 = vmatpush.msra.mxu0 0.0
    %63 = vmatpush.msra.mxu0 0.0
    %64 = vmatpush.msra.mxu0 0.0
    %65 = vmatpush.msra.mxu0 0.0
    %66 = vmatpush.msra.mxu0 0.0
    %67 = vmatpush.msra.mxu0 0.0
    %68 = vmatpush.msra.mxu0 0.0
    %69 = vmatpush.msra.mxu0 %v50
    %70 = vmatmul.f32.gmra.mxu0 %v35
    %v71 = vpop.f32.mrf.mxu0
    %v72 = vadd.f32 0.0, %v71
    %73 = vmatmul.f32.gmra.mxu0 %v38
    %v74 = vpop.f32.mrf.mxu0
    %v75 = vadd.f32 0.0, %v74
    %76 = vmatmul.f32.gmra.mxu0 %v41
    %v77 = vpop.f32.mrf.mxu0
    %v78 = vadd.f32 0.0, %v77
    %79 = vmatmul.f32.gmra.mxu0 %v44
    %v80 = vpop.f32.mrf.mxu0
    %v81 = vadd.f32 0.0, %v80
    %82 = vmatmul.f32.gmra.mxu0 %v47
    %v83 = vpop.f32.mrf.mxu0
    %v84 = vadd.f32 0.0, %v83
    %85 = vdwg.mxu0
    %86 = vmatpush.msra.mxu0 0.0
    %87 = vmatpush.msra.mxu0 0.0
    %88 = vmatpush.msra.mxu0 0.0
    %89 = vmatpush.msra.mxu0 0.0
    %90 = vmatpush.msra.mxu0 0.0
    %91 = vmatpush.msra.mxu0 0.0
    %92 = vmatpush.msra.mxu0 0.0
    %93 = vmatpush.msra.mxu0 0.0
    %94 = vmatpush.msra.mxu0 0.0
    %95 = vmatpush.msra.mxu0 0.0
    %96 = vmatpush.msra.mxu0 0.0
    %97 = vmatpush.msra.mxu0 0.0
    %98 = vmatpush.msra.mxu0 0.0
    %99 = vmatpush.msra.mxu0 0.0
    %100 = vmatpush.msra.mxu0 0.0
    %101 = vmatpush.msra.mxu0 %v52
    %102 = vmatmul.f32.gmra.mxu0 %v35
    %v103 = vpop.f32.mrf.mxu0
    %v104 = vadd.f32 0.0, %v103
    %105 = vmatmul.f32.gmra.mxu0 %v38
    %v106 = vpop.f32.mrf.mxu0
    %v107 = vadd.f32 0.0, %v106
    %108 = vmatmul.f32.gmra.mxu0 %v41
    %v109 = vpop.f32.mrf.mxu0
    %v110 = vadd.f32 0.0, %v109
    %111 = vmatmul.f32.gmra.mxu0 %v44
    %v112 = vpop.f32.mrf.mxu0
    %v113 = vadd.f32 0.0, %v112
    %114 = vmatmul.f32.gmra.mxu0 %v47
    %v115 = vpop.f32.mrf.mxu0
    %v116 = vadd.f32 0.0, %v115
    %117 = vdwg.mxu0
    %119 = vset.pattern.permute.xlu0 0
    %120 = vperm.xlu0 %119, %v23
    %v121 = vpop.permute.xlu0 %120
    %123 = vrot.lane.b32.xlu0 %v72, 17
    %v124 = vpop.permute.xlu0 %123
    %125 = vrot.lane.b32.xlu0 %v104, 17
    %v126 = vpop.permute.xlu0 %125
    %v127 = vlaneseq
    %v128 = vand.u32 %v127, 127
    %vm129 = vcmp.lt.s32.totalorder %v128, 17
    %v130 = vsel %vm129, %v124, %v126
    %v131 = vsel %vm129, %v126, %v124
    %v133 = vperm.slane %v24, 0
    %v134 = vperm.slane %v24, 1
    %v137 = vmul.f32 %v131, %v133
    %v138 = vmul.f32 %v130, %v134
    %v139 = vadd.f32 %v121, %v137
    %v140 = vadd.f32 %v121, %v138
    %141 = vrot.lane.b32.xlu0 %v75, 16
    %v142 = vpop.permute.xlu0 %141
    %143 = vrot.lane.b32.xlu0 %v107, 16
    %v144 = vpop.permute.xlu0 %143
    %vm145 = vcmp.lt.s32.totalorder %v128, 16
    %v146 = vsel %vm145, %v142, %v144
    %v147 = vsel %vm145, %v144, %v142
    %v149 = vperm.slane %v25, 0
    %v150 = vperm.slane %v25, 1
    %v153 = vmul.f32 %v147, %v149
    %v154 = vmul.f32 %v146, %v150
    %v155 = vadd.f32 %v139, %v153
    %v156 = vadd.f32 %v140, %v154
    %157 = vrot.lane.b32.xlu0 %v78, 15
    %v158 = vpop.permute.xlu0 %157
    %159 = vrot.lane.b32.xlu0 %v110, 15
    %v160 = vpop.permute.xlu0 %159
    %vm161 = vcmp.lt.s32.totalorder %v128, 15
    %v162 = vsel %vm161, %v158, %v160
    %v163 = vsel %vm161, %v160, %v158
    %v165 = vperm.slane %v26, 0
    %v166 = vperm.slane %v26, 1
    %v169 = vmul.f32 %v163, %v165
    %v170 = vmul.f32 %v162, %v166
    %v171 = vadd.f32 %v155, %v169
    %v172 = vadd.f32 %v156, %v170
    %173 = vrot.lane.b32.xlu0 %v81, 1
    %v174 = vpop.permute.xlu0 %173
    %175 = vrot.lane.b32.xlu0 %v113, 1
    %v176 = vpop.permute.xlu0 %175
    %vm177 = vcmp.lt.s32.totalorder %v128, 1
    %v178 = vsel %vm177, %v174, %v176
    %v179 = vsel %vm177, %v176, %v174
    %v181 = vperm.slane %v27, 0
    %v182 = vperm.slane %v27, 1
    %v185 = vmul.f32 %v179, %v181
    %v186 = vmul.f32 %v178, %v182
    %v187 = vadd.f32 %v171, %v185
    %v188 = vadd.f32 %v172, %v186
    %v189 = vadd.f32 %v187, %v84
    %v190 = vadd.f32 %v188, %v116
    %191 = vst [vmem:[#allocation2] sm:$0xff] %v189
    %192 = vst [vmem:[#allocation2 + $0x8] sm:$0xff] %v190
    %s193 = scalar_lea.vmem %s0, 8
    %v194 = vld [vmem:[%s193] sm:$0xff]
    %196 = vst [vmem:[#allocation1] ss:$2 sm:$0xff] %v194
    %v197 = vld.sshfl [vmem:[#allocation1] sm:$0xff pattern:$0x75316420]
    %v198 = vld.sshfl [vmem:[#allocation1 + $0x8] sm:$0xff pattern:$0x75316420]
    %v199 = vsel %vm49, %v197, 0
    %v201 = vsel %vm49, %v198, 0
    %203 = vmatpush.msra.mxu0 0.0
    %204 = vmatpush.msra.mxu0 0.0
    %205 = vmatpush.msra.mxu0 0.0
    %206 = vmatpush.msra.mxu0 0.0
    %207 = vmatpush.msra.mxu0 0.0
    %208 = vmatpush.msra.mxu0 0.0
    %209 = vmatpush.msra.mxu0 0.0
    %210 = vmatpush.msra.mxu0 0.0
    %211 = vmatpush.msra.mxu0 0.0
    %212 = vmatpush.msra.mxu0 0.0
    %213 = vmatpush.msra.mxu0 0.0
    %214 = vmatpush.msra.mxu0 0.0
    %215 = vmatpush.msra.mxu0 0.0
    %216 = vmatpush.msra.mxu0 0.0
    %217 = vmatpush.msra.mxu0 0.0
    %218 = vmatpush.msra.mxu0 %v199
    %219 = vmatmul.f32.gmra.mxu0 %v35
    %v220 = vpop.f32.mrf.mxu0
    %v221 = vadd.f32 0.0, %v220
    %222 = vmatmul.f32.gmra.mxu0 %v38
    %v223 = vpop.f32.mrf.mxu0
    %v224 = vadd.f32 0.0, %v223
    %225 = vmatmul.f32.gmra.mxu0 %v41
    %v226 = vpop.f32.mrf.mxu0
    %v227 = vadd.f32 0.0, %v226
    %228 = vmatmul.f32.gmra.mxu0 %v44
    %v229 = vpop.f32.mrf.mxu0
    %v230 = vadd.f32 0.0, %v229
    %231 = vmatmul.f32.gmra.mxu0 %v47
    %v232 = vpop.f32.mrf.mxu0
    %v233 = vadd.f32 0.0, %v232
    %234 = vdwg.mxu0
    %235 = vmatpush.msra.mxu0 0.0
    %236 = vmatpush.msra.mxu0 0.0
    %237 = vmatpush.msra.mxu0 0.0
    %238 = vmatpush.msra.mxu0 0.0
    %239 = vmatpush.msra.mxu0 0.0
    %240 = vmatpush.msra.mxu0 0.0
    %241 = vmatpush.msra.mxu0 0.0
    %242 = vmatpush.msra.mxu0 0.0
    %243 = vmatpush.msra.mxu0 0.0
    %244 = vmatpush.msra.mxu0 0.0
    %245 = vmatpush.msra.mxu0 0.0
    %246 = vmatpush.msra.mxu0 0.0
    %247 = vmatpush.msra.mxu0 0.0
    %248 = vmatpush.msra.mxu0 0.0
    %249 = vmatpush.msra.mxu0 0.0
    %250 = vmatpush.msra.mxu0 %v201
    %251 = vmatmul.f32.gmra.mxu0 %v35
    %v252 = vpop.f32.mrf.mxu0
    %v253 = vadd.f32 0.0, %v252
    %254 = vmatmul.f32.gmra.mxu0 %v38
    %v255 = vpop.f32.mrf.mxu0
    %v256 = vadd.f32 0.0, %v255
    %257 = vmatmul.f32.gmra.mxu0 %v41
    %v258 = vpop.f32.mrf.mxu0
    %v259 = vadd.f32 0.0, %v258
    %260 = vmatmul.f32.gmra.mxu0 %v44
    %v261 = vpop.f32.mrf.mxu0
    %v262 = vadd.f32 0.0, %v261
    %263 = vmatmul.f32.gmra.mxu0 %v47
    %v264 = vpop.f32.mrf.mxu0
    %v265 = vadd.f32 0.0, %v264
    %266 = vdwg.mxu0
    %267 = vrot.lane.b32.xlu0 %v221, 17
    %v268 = vpop.permute.xlu0 %267
    %269 = vrot.lane.b32.xlu0 %v253, 17
    %v270 = vpop.permute.xlu0 %269
    %v271 = vsel %vm129, %v268, %v270
    %v272 = vsel %vm129, %v270, %v268
    %v273 = vmul.f32 %v272, %v133
    %v274 = vmul.f32 %v271, %v134
    %v275 = vadd.f32 %v121, %v273
    %v276 = vadd.f32 %v121, %v274
    %277 = vrot.lane.b32.xlu0 %v224, 16
    %v278 = vpop.permute.xlu0 %277
    %279 = vrot.lane.b32.xlu0 %v256, 16
    %v280 = vpop.permute.xlu0 %279
    %v281 = vsel %vm145, %v278, %v280
    %v282 = vsel %vm145, %v280, %v278
    %v283 = vmul.f32 %v282, %v149
    %v284 = vmul.f32 %v281, %v150
    %v285 = vadd.f32 %v275, %v283
    %v286 = vadd.f32 %v276, %v284
    %287 = vrot.lane.b32.xlu0 %v227, 15
    %v288 = vpop.permute.xlu0 %287
    %289 = vrot.lane.b32.xlu0 %v259, 15
    %v290 = vpop.permute.xlu0 %289
    %v291 = vsel %vm161, %v288, %v290
    %v292 = vsel %vm161, %v290, %v288
    %v293 = vmul.f32 %v292, %v165
    %v294 = vmul.f32 %v291, %v166
    %v295 = vadd.f32 %v285, %v293
    %v296 = vadd.f32 %v286, %v294
    %297 = vrot.lane.b32.xlu0 %v230, 1
    %v298 = vpop.permute.xlu0 %297
    %299 = vrot.lane.b32.xlu0 %v262, 1
    %v300 = vpop.permute.xlu0 %299
    %v301 = vsel %vm177, %v298, %v300
    %v302 = vsel %vm177, %v300, %v298
    %v303 = vmul.f32 %v302, %v181
    %v304 = vmul.f32 %v301, %v182
    %v305 = vadd.f32 %v295, %v303
    %v306 = vadd.f32 %v296, %v304
    %v307 = vadd.f32 %v305, %v233
    %v308 = vadd.f32 %v306, %v265
    %s309 = scalar_lea.vmem [#allocation2], 16
    %310 = vst [vmem:[%s309] sm:$0xff] %v307
    %311 = vst [vmem:[%s309 + $0x8] sm:$0xff] %v308
    // Predicated region
    $region18: #{tpu_custom_call.1} parent=1 // pred_check
      _
    $region19: #{tpu_custom_call.1} parent=1 // pred_check_branch
      %313 = sbr.rel (0) target = $region21
    $region20: #{tpu_custom_call.1} parent=1 // pred_region
      %315 = vsyncadd [#allocation3], 0
      %s316 = sshll.u32 [#allocation2], 4
      %s317 = int_to_ptr.vmem [resolvable:$true] %s316
      %s318 = sshll.u32 %s4, 4
      %s319 = int_to_ptr.hbm [resolvable:$true] %s318
      %324 = dma.vmem_to_hbm [thread:$0]  %s317, 512, %s319, [#allocation3], 256, 256, 16
    $region21: #{tpu_custom_call.1} parent=1 // pred_fallthru
      _
    // Predicated region
    $region22: #{tpu_custom_call.1} parent=1 // pred_check
      _
    $region23: #{tpu_custom_call.1} parent=1 // pred_check_branch
      %326 = sbr.rel (0) target = $region25
    $region24: #{tpu_custom_call.1} parent=1 // pred_region
      %328 = dma.done [#allocation3], 512
    $region25: #{tpu_custom_call.1} parent=1 // pred_fallthru
      _
    %329 = vsyncpa [#allocation3], 1

</llo_original>
